<compile_context>
chip_gen: v5e
topology: v5e:2x2
jax: 0.10.0
libtpu: 0.0.40
codegen_flags: <defaults>
</compile_context>

<pallas_src>
import numpy as np
import jax
import jax.numpy as jnp
from jax.experimental import pallas as pl
from jax.experimental.pallas import tpu as pltpu


def _ceil_to(x, m):
    return -(-int(x) // m) * m


def _tens_trans_kernel(x_ref, m_ref, out_ref):
    """One batch tile:
       x_ref:   (tn, dim_in * S)            input rows (caller dtype)
       m_ref:   (dim_in * S, dim_out * S)   fused weight kron(W.T, P) in compute dtype
       out_ref: (tn, dim_out * S)
    Cast to compute dtype (VPU, hidden under DMA) + one MXU matmul with f32 accumulation
    + one lane-dense full-block store."""
    x = x_ref[...].astype(m_ref.dtype)
    out_ref[...] = jnp.dot(
        x, m_ref[...], preferred_element_type=jnp.float32
    ).astype(out_ref.dtype)


class TensTransPallas:
    """Pallas TPU implementation of TensTrans.forward."""

    def __init__(self, inds, idx_0, idx_1, dim_in, dim_out, key=None,
                 tile_n=1024, compute_dtype=jnp.bfloat16, out_dtype=None,
                 vmem_budget_bytes=48 << 20):
        assert 0 <= idx_0 < inds, "index 0 out of range"
        assert 0 <= idx_1 < inds, "index 1 out of range"
        assert idx_0 != idx_1, "can't swap dim with itself"
        self.inds = inds
        self.idx_0, self.idx_1 = idx_0, idx_1
        self.dim_in, self.dim_out = dim_in, dim_out
        self.S = 3 ** inds
        self.tile_n = int(tile_n)
        self.compute_dtype = jnp.dtype(compute_dtype)
        self.out_dtype = None if out_dtype is None else jnp.dtype(out_dtype)
        self.vmem_budget_bytes = int(vmem_budget_bytes)
        self._fn_cache = {}

        if key is None:
            key = jax.random.PRNGKey(0)
        # PyTorch TensLinear.self_init: W ~ Normal(0, fan_in**-0.5), shape (dim_out, dim_in)
        self.W = jax.random.normal(key, (dim_out, dim_in), jnp.float32) * dim_in ** -0.5

        # sigma(s): flattened-spatial-index permutation corresponding to swapping trailing
        # 3-dims number idx_0 and idx_1 (row-major flattening, digit 0 most significant).
        S = self.S
        sigma = np.zeros(S, dtype=np.int64)
        for s in range(S):
            digits = []
            r = s
            for _ in range(inds):
                digits.append(r % 3)
                r //= 3
            digits = digits[::-1]
            digits[idx_0], digits[idx_1] = digits[idx_1], digits[idx_0]
            sp = 0
            for d in digits:
                sp = sp * 3 + d
            sigma[s] = sp
        # P[s', s] = 1 iff s' == sigma(s)   (so xt_flat[..., s] = x_flat[..., sigma(s)])
        P = np.zeros((S, S), dtype=np.float32)
        P[sigma, np.arange(S)] = 1.0
        # Fused weight: out_flat[n, o*S + s] = sum_i W[o, i] * x_flat[n, i*S + sigma(s)]
        #   <=>  out_flat = x_flat @ M_T  with  M_T = kron(W.T, P).
        # Stored in the compute dtype (bf16 default): halves its HBM read & VMEM footprint.
        self.M_T = jnp.asarray(np.kron(np.asarray(self.W).T, P), dtype=self.compute_dtype)

    # ---- tiling / resource planning ---------------------------------------------------

    def _choose_tn(self, N, x_itemsize, out_itemsize):
        DinS_l = _ceil_to(self.dim_in * self.S, 128)     # lane-padded widths: what VMEM
        DoutS_l = _ceil_to(self.dim_out * self.S, 128)   # actually allocates per row
        w_itemsize = self.M_T.dtype.itemsize
        weight_vmem = 2 * _ceil_to(self.dim_in * self.S, 8) * DoutS_l * w_itemsize
        if weight_vmem > self.vmem_budget_bytes // 2:
            # TODO(synk): two-stage kernel (channel matmul + XLU spatial permute) for fused
            # kron weights too large for VMEM (generation-aware: v7x has only 64 MiB).
            raise NotImplementedError(
                "fused kron(W.T, P) weight exceeds the VMEM budget; two-stage kernel needed")
        # >= 2 grid steps whenever possible so both v7x TensorCores get work
        # (grid axis is "parallel"); harmless on single-TC generations.
        tn = min(self.tile_n, max(8, _ceil_to(-(-N // 2), 8)))
        # Cap tn so double-buffered, lane-padded in/out tiles + the weight fit the budget.
        per_row = 2 * (DinS_l * x_itemsize + DoutS_l * out_itemsize)
        max_rows = (self.vmem_budget_bytes - weight_vmem) // per_row
        return max(8, min(tn, (max_rows // 8) * 8))

    def _build(self, N, tn, x_dtype, out_dtype, single_buffer_weight):
        DinS = self.dim_in * self.S
        DoutS = self.dim_out * self.S
        x_b = jnp.dtype(x_dtype).itemsize
        o_b = jnp.dtype(out_dtype).itemsize
        w_b = self.M_T.dtype.itemsize

        w_kwargs = {}
        if single_buffer_weight:
            # The fused weight is grid-invariant: single-buffer it (halves its VMEM cost,
            # matters for big weights on v7x's 64 MiB VMEM).
            w_kwargs["pipeline_mode"] = pl.Buffered(1)
        in_specs = [
            pl.BlockSpec((tn, DinS), lambda i: (i, 0)),
            pl.BlockSpec((DinS, DoutS), lambda i: (0, 0), **w_kwargs),
        ]
        out_specs = pl.BlockSpec((tn, DoutS), lambda i: (i, 0))

        # VMEM accounting with lane/sublane-padded tile shapes.
        DinS_l, DoutS_l = _ceil_to(DinS, 128), _ceil_to(DoutS, 128)
        n_wbuf = 1 if single_buffer_weight else 2
        vmem_bytes = (2 * tn * DinS_l * x_b
                      + 2 * tn * DoutS_l * o_b
                      + n_wbuf * _ceil_to(DinS, 8) * DoutS_l * w_b)
        vmem_limit = min(max(2 * vmem_bytes + (2 << 20), 16 << 20), 64 << 20)

        cost = pl.CostEstimate(
            flops=2 * N * DinS * DoutS,
            bytes_accessed=N * DinS * x_b + N * DoutS * o_b + DinS * DoutS * w_b,
            transcendentals=0,
        )
        return pl.pallas_call(
            _tens_trans_kernel,
            out_shape=jax.ShapeDtypeStruct((N, DoutS), out_dtype),
            grid=(pl.cdiv(N, tn),),   # ragged last block -> masked writeback, no host pad
            in_specs=in_specs,
            out_specs=out_specs,
            compiler_params=pltpu.CompilerParams(
                dimension_semantics=("parallel",),
                vmem_limit_bytes=int(vmem_limit),
            ),
            cost_estimate=cost,
        )

    def _run(self, x_flat, N, tn, out_dtype):
        cache_key = (N, tn, str(x_flat.dtype), str(out_dtype))
        fn = self._fn_cache.get(cache_key)
        if fn is not None:
            return fn(x_flat, self.M_T)
        err = None
        for single_buf in (True, False):
            try:
                fn = self._build(N, tn, x_flat.dtype, out_dtype, single_buf)
                out = fn(x_flat, self.M_T)
            except Exception as e:   # e.g. pipeline_mode / Buffered(1) unsupported -> retry
                err = e
                continue
            self._fn_cache[cache_key] = fn
            return out
        raise err

    # ---- forward -----------------------------------------------------------------------

    def __call__(self, x):
        # x: (*batch, dim_in, 3, ..., 3) with `inds` trailing 3-dims
        batch = x.shape[: x.ndim - 1 - self.inds]
        assert x.shape[len(batch)] == self.dim_in
        assert x.shape[len(batch) + 1:] == (3,) * self.inds
        out_dtype = self.out_dtype or jnp.promote_types(x.dtype, jnp.float32)
        out_shape = (*batch, self.dim_out) + (3,) * self.inds
        N = int(np.prod(batch)) if len(batch) else 1
        if N == 0:
            return jnp.zeros(out_shape, out_dtype)
        # Reshape only (free): no transpose, no dtype cast, no padding on the host side.
        x_flat = x.reshape(N, self.dim_in * self.S)
        tn = self._choose_tn(N, jnp.dtype(x_flat.dtype).itemsize,
                             jnp.dtype(out_dtype).itemsize)
        out = self._run(x_flat, N, tn, out_dtype)
        return out.reshape(out_shape)


def reference(mod: TensTransPallas, x):
    """Pure-JAX (f32) replica of the PyTorch TensTrans forward for verification."""
    xt = jnp.swapaxes(x, mod.idx_0 - mod.inds, mod.idx_1 - mod.inds)
    t = ''.join(chr(ord('i') + n) for n in range(mod.inds))
    return jnp.einsum(f'OI,...I{t}->...O{t}', mod.W, xt.astype(jnp.float32))


if __name__ == "__main__":
    key = jax.random.PRNGKey(0)
    k_x1, k_x2, k_w1, k_w2 = jax.random.split(key, 4)

    # Config A: rank-2 spatial tensors (inds=2), swap the two spatial dims; bf16 compute.
    mod_a = TensTransPallas(inds=2, idx_0=0, idx_1=1, dim_in=16, dim_out=32, key=k_w1)
    x_a = jax.random.normal(k_x1, (4, 8, 16, 3, 3), jnp.float32)
    out_a = jax.block_until_ready(mod_a(x_a))
    ref_a = reference(mod_a, x_a)
    assert out_a.shape == (4, 8, 32, 3, 3)
    np.testing.assert_allclose(np.asarray(out_a), np.asarray(ref_a), rtol=2e-2, atol=2e-2)

    # Config A again in full f32 compute (exact path), to exercise both precision modes.
    mod_a32 = TensTransPallas(inds=2, idx_0=0, idx_1=1, dim_in=16, dim_out=32, key=k_w1,
                              compute_dtype=jnp.float32)
    out_a32 = jax.block_until_ready(mod_a32(x_a))
    np.testing.assert_allclose(np.asarray(out_a32), np.asarray(ref_a), rtol=1e-4, atol=1e-4)

    # Config B: rank-3 spatial tensors (inds=3), swap non-adjacent dims 0 and 2,
    # N=6 batch rows exercise the ragged (masked) last-block path with no host padding.
    mod_b = TensTransPallas(inds=3, idx_0=0, idx_1=2, dim_in=8, dim_out=16, key=k_w2)
    x_b = jax.random.normal(k_x2, (2, 3, 8, 3, 3, 3), jnp.float32)
    out_b = jax.block_until_ready(mod_b(x_b))
    ref_b = reference(mod_b, x_b)
    assert out_b.shape == (2, 3, 16, 3, 3, 3)
    np.testing.assert_allclose(np.asarray(out_b), np.asarray(ref_b), rtol=2e-2, atol=2e-2)

    print("KERNEL_OK")
</pallas_src>

<mosaic_0001>
module attributes {stable_mosaic.version = 11 : i64} {
  func.func @_tens_trans_kernel(%arg0: i32, %arg1: memref<16x144xf32, #tpu.memory_space<vmem>>, %arg2: memref<144x288xbf16, #tpu.memory_space<vmem>>, %arg3: memref<16x288xf32, #tpu.memory_space<vmem>>) attributes {dimension_semantics = [#tpu.dimension_semantics<parallel>], iteration_bounds = array<i64: 2>, scalar_prefetch = 0 : i64, scratch_operands = 0 : i64, tpu.core_type = #tpu.core_type<tc>, window_params = [{transform_indices = @transform_0, window_bounds = array<i64: 16, 144>}, {pipeline_mode = #tpu.pipeline_mode<synchronous>, transform_indices = @transform_1, window_bounds = array<i64: 144, 288>}, {transform_indices = @transform_2, window_bounds = array<i64: 16, 288>}]} {
    %c0 = arith.constant 0 : index
    %c0_0 = arith.constant 0 : index
    %0 = vector.load %arg1[%c0, %c0_0] : memref<16x144xf32, #tpu.memory_space<vmem>>, vector<16x144xf32>
    %1 = arith.truncf %0 : vector<16x144xf32> to vector<16x144xbf16>
    %c0_1 = arith.constant 0 : index
    %c0_2 = arith.constant 0 : index
    %2 = vector.load %arg2[%c0_1, %c0_2] : memref<144x288xbf16, #tpu.memory_space<vmem>>, vector<144x288xbf16>
    %cst = arith.constant dense<0.000000e+00> : vector<16x288xf32>
    %3 = tpu.matmul %1, %2, %cst {dimension_numbers = #tpu.dot_dimension_numbers<[1], [0], [0], [1], [0, 0, 1, 1], [], []>} : vector<16x144xbf16>, vector<144x288xbf16>, vector<16x288xf32> -> vector<16x288xf32>
    %c0_3 = arith.constant 0 : index
    %c0_4 = arith.constant 0 : index
    %4 = vector.load %arg3[%c0_3, %c0_4] : memref<16x288xf32, #tpu.memory_space<vmem>>, vector<16x288xf32>
    tpu.vector_store %arg3[%c0_3, %c0_4], %3 {strides = array<i32>} : memref<16x288xf32, #tpu.memory_space<vmem>>, vector<16x288xf32>,
    return
  }
  func.func @transform_0(%arg0: i32) -> (i32, i32) {
    %c0_i32 = arith.constant 0 : i32
    %c0_i32_0 = arith.constant 0 : i32
    return %arg0, %c0_i32 : i32, i32
  }
  func.func @transform_1(%arg0: i32) -> (i32, i32) {
    %c0_i32 = arith.constant 0 : i32
    %c0_i32_0 = arith.constant 0 : i32
    %c0_i32_1 = arith.constant 0 : i32
    return %c0_i32, %c0_i32_0 : i32, i32
  }
  func.func @transform_2(%arg0: i32) -> (i32, i32) {
    %c0_i32 = arith.constant 0 : i32
    %c0_i32_0 = arith.constant 0 : i32
    return %arg0, %c0_i32 : i32, i32
  }
}

module attributes {stable_mosaic.version = 11 : i64} {
  func.func @_tens_trans_kernel(%arg0: i32, %arg1: memref<16x144xf32, #tpu.memory_space<vmem>>, %arg2: memref<144x288xbf16, #tpu.memory_space<vmem>>, %arg3: memref<16x288xf32, #tpu.memory_space<vmem>>) attributes {dimension_semantics = [#tpu.dimension_semantics<parallel>], iteration_bounds = array<i64: 2>, scalar_prefetch = 0 : i64, scratch_operands = 0 : i64, tpu.core_type = #tpu.core_type<tc>, window_params = [{transform_indices = @transform_0, window_bounds = array<i64: 16, 144>}, {pipeline_mode = #tpu.pipeline_mode<synchronous>, transform_indices = @transform_1, window_bounds = array<i64: 144, 288>}, {transform_indices = @transform_2, window_bounds = array<i64: 16, 288>}]} {
    %c0 = arith.constant 0 : index
    %c0_0 = arith.constant 0 : index
    %0 = vector.load %arg1[%c0, %c0_0] : memref<16x144xf32, #tpu.memory_space<vmem>>, vector<16x144xf32>
    %1 = arith.truncf %0 : vector<16x144xf32> to vector<16x144xbf16>
    %c0_1 = arith.constant 0 : index
    %c0_2 = arith.constant 0 : index
    %2 = vector.load %arg2[%c0_1, %c0_2] : memref<144x288xbf16, #tpu.memory_space<vmem>>, vector<144x288xbf16>
    %cst = arith.constant dense<0.000000e+00> : vector<16x288xf32>
    %3 = tpu.matmul %1, %2, %cst {dimension_numbers = #tpu.dot_dimension_numbers<[1], [0], [0], [1], [0, 0, 1, 1], [], []>} : vector<16x144xbf16>, vector<144x288xbf16>, vector<16x288xf32> -> vector<16x288xf32>
    %c0_3 = arith.constant 0 : index
    %c0_4 = arith.constant 0 : index
    %4 = vector.load %arg3[%c0_3, %c0_4] : memref<16x288xf32, #tpu.memory_space<vmem>>, vector<16x288xf32>
    tpu.vector_store %arg3[%c0_3, %c0_4], %3 {strides = array<i32>} : memref<16x288xf32, #tpu.memory_space<vmem>>, vector<16x288xf32>,
    return
  }
  func.func @transform_0(%arg0: i32) -> (i32, i32) {
    %c0_i32 = arith.constant 0 : i32
    %c0_i32_0 = arith.constant 0 : i32
    return %arg0, %c0_i32 : i32, i32
  }
  func.func @transform_1(%arg0: i32) -> (i32, i32) {
    %c0_i32 = arith.constant 0 : i32
    %c0_i32_0 = arith.constant 0 : i32
    %c0_i32_1 = arith.constant 0 : i32
    return %c0_i32, %c0_i32_0 : i32, i32
  }
  func.func @transform_2(%arg0: i32) -> (i32, i32) {
    %c0_i32 = arith.constant 0 : i32
    %c0_i32_0 = arith.constant 0 : i32
    return %arg0, %c0_i32 : i32, i32
  }
}

</mosaic_0001>

<llo_original>
// kernel: tpu_custom_call.1
$region0: #{tpu_custom_call.1}
  #allocation0 [shape = 'u32[]', space=smem, size = 0x4, offset = 0x4, fixed_abs, tag = 'smem constant byte address 0x4 - core index']
  #allocation1 [shape = 'u32[72,128]{1,0:T(1,128)}', space=vmem, size = 0x9000, scoped, tag = 'internal scratch']
  %s0 = inlined_call_operand.hbm [shape: f32[32,144], index: 0, kind: input, shape index: {}]
  %s1 = inlined_call_operand.hbm [shape: bf16[144,288], index: 1, kind: input, shape index: {}]
  %s2 = inlined_call_operand.hbm [shape: f32[32,288], index: 2, kind: output, shape index: {}]
  %s3 = sld [smem:[#allocation0]]
  $region49: #{tpu_custom_call.1} parent=0
    _
  %s5 = ssub.s32 1, %s3
  %s6 = scalar_select 0, %s5, %s3
  $region1: #{tpu_custom_call.1} parent=0
    #allocation2 [shape = 'u8[32768]{0}', space=vmem, size = 0x8000, scoped, tag = 'input window, operand 0']
    #allocation3 [shape = 's32[2]{0}', space=sflag, size = 0x8, scoped, tag = 'scoped memory for tpu_custom_call.1']
    #allocation4 [shape = 's32[2]{0}', space=sflag, size = 0x8, scoped, tag = 'scoped memory for tpu_custom_call.1']
    #allocation5 [shape = 'u8[110592]{0}', space=vmem, size = 0x1b000, scoped, tag = 'input window, operand 1, single buffered']
    #allocation6 [shape = 's32[1]{0}', space=sflag, size = 0x4, scoped, tag = 'scoped memory for tpu_custom_call.1']
    #allocation7 [shape = 'u8[49152]{0}', space=vmem, size = 0xc000, scoped, tag = 'output window, operand 0']
    %7 = vsyncpa [#allocation3], 0
    %s8 = scalar_lea.sflag [#allocation3], 1
    %9 = vsyncpa %s8, 0
    %10 = vsyncpa [#allocation6], 0
    %11 = vsyncpa [#allocation4], 0
    %s12 = scalar_lea.sflag [#allocation4], 1
    %13 = vsyncpa %s12, 0
    loop: start=0, step=1, limit=4
    $region2: #{tpu_custom_call.1} parent=1 // loop_pre_header
      _
    $region3: #{tpu_custom_call.1} parent=1 // loop_header
      %s15 = sphi 0, %s19
      %p16 = scmp.ge.s32.totalorder %s15, 4
      %s25 = sphi 0, %s27
      %s28 = sphi 0, %s25
      %s29 = sphi 0, %s28
      %s45 = sphi 0, %s29
      %s49 = sphi 0, %s49
      %s51 = sphi 0, %s49
      %s52 = sphi 0, %s51
      %s66 = sphi 0, %s52
      %s72 = sphi 0, %s74
      %s75 = sphi 0, %s72
      %s76 = sphi 0, %s75
      %s92 = sphi 0, %s76
    $region4: #{tpu_custom_call.1} parent=1 // loop_header_branch
      %18 = sbr.rel (%p16) target = $region8
    $region5: #{tpu_custom_call.1} parent=1 // loop_body
      %s20 = ssub.s32 %s15, 1
      %s21 = ssub.s32 %s15, 2
      %s22 = sadd.s32 %s15, 1
      %s23 = ssub.s32 %s15, %s22
      %p24 = scmp.eq.s32.totalorder %s23, 0
      %s26 = sadd.s32 %s25, 1
      %s27 = scalar_select %p24, %s25, %s26
      %p30 = pneg %p24
      %p31 = scmp.eq.s32.totalorder %s15, 1
      %p32 = por %p30, %p31
      %p33 = scmp.ne.s32.totalorder %s25, %s28
      %p34 = scmp.eq.s32.totalorder %s15, 0
      %p35 = por %p33, %p34
      %p36 = scmp.ne.s32.totalorder %s25, %s28
      %p37 = scmp.eq.s32.totalorder %s20, 1
      %p38 = por %p36, %p37
      %p39 = scmp.ne.s32.totalorder %s28, %s29
      %p40 = scmp.eq.s32.totalorder %s20, 0
      %p41 = por %p39, %p40
      %p42 = scmp.ne.s32.totalorder %s28, %s29
      %p43 = scmp.eq.s32.totalorder %s21, 1
      %p44 = por %p42, %p43
      %p46 = scmp.ne.s32.totalorder %s29, %s45
      %p47 = scmp.eq.s32.totalorder %s21, 0
      %p48 = por %p46, %p47
      %s50 = sadd.s32 %s49, 1
      %p53 = scmp.eq.s32.totalorder %s15, 1
      %p54 = scmp.ne.s32.totalorder %s49, %s51
      %p55 = scmp.eq.s32.totalorder %s15, 0
      %p56 = por %p54, %p55
      %p57 = scmp.ne.s32.totalorder %s49, %s51
      %p58 = scmp.eq.s32.totalorder %s20, 1
      %p59 = por %p57, %p58
      %p60 = scmp.ne.s32.totalorder %s51, %s52
      %p61 = scmp.eq.s32.totalorder %s20, 0
      %p62 = por %p60, %p61
      %p63 = scmp.ne.s32.totalorder %s51, %s52
      %p64 = scmp.eq.s32.totalorder %s21, 1
      %p65 = por %p63, %p64
      %p67 = scmp.ne.s32.totalorder %s52, %s66
      %p68 = scmp.eq.s32.totalorder %s21, 0
      %p69 = por %p67, %p68
      %s70 = ssub.s32 %s15, %s22
      %p71 = scmp.eq.s32.totalorder %s70, 0
      %s73 = sadd.s32 %s72, 1
      %s74 = scalar_select %p71, %s72, %s73
      %p77 = pneg %p71
      %p78 = scmp.eq.s32.totalorder %s15, 1
      %p79 = por %p77, %p78
      %p80 = scmp.ne.s32.totalorder %s72, %s75
      %p81 = scmp.eq.s32.totalorder %s15, 0
      %p82 = por %p80, %p81
      %p83 = scmp.ne.s32.totalorder %s72, %s75
      %p84 = scmp.eq.s32.totalorder %s20, 1
      %p85 = por %p83, %p84
      %p86 = scmp.ne.s32.totalorder %s75, %s76
      %p87 = scmp.eq.s32.totalorder %s20, 0
      %p88 = por %p86, %p87
      %p89 = scmp.ne.s32.totalorder %s75, %s76
      %p90 = scmp.eq.s32.totalorder %s21, 1
      %p91 = por %p89, %p90
      %p93 = scmp.ne.s32.totalorder %s76, %s92
      %p94 = scmp.eq.s32.totalorder %s21, 0
      %p95 = por %p93, %p94
      %p96 = scmp.le.s32.totalorder 1, %s15
      %p97 = scmp.lt.s32.totalorder %s15, 3
      %p98 = pnand %p96, %p97
      %p99 = pneg %p98
      // Predicated region
      $region9: #{tpu_custom_call.1} parent=5 // pred_check
        _
      $region10: #{tpu_custom_call.1} parent=5 // pred_check_branch
        %101 = sbr.rel (%p98) target = $region12
      $region11: #{tpu_custom_call.1} parent=5 // pred_region
        %s102 = ssub.s32 %s15, 1
        // Predicated region
        $region13: #{tpu_custom_call.1} parent=11 // pred_check
          %p103 = pneg %p62
        $region14: #{tpu_custom_call.1} parent=11 // pred_check_branch
          %105 = sbr.rel (%p103) target = $region16
        $region15: #{tpu_custom_call.1} parent=11 // pred_region
          %107 = vsyncadd [#allocation6], 0
          %s108 = sshll.u32 %s1, 4
          %s109 = int_to_ptr.hbm [resolvable:$true] %s108
          %s110 = sshll.u32 [#allocation5], 4
          %s111 = int_to_ptr.vmem [resolvable:$true] %s110
          %116 = dma.hbm_to_vmem [thread:$0]  %s109, 3456, %s111, [#allocation6], 192, 192, 12
        $region16: #{tpu_custom_call.1} parent=11 // pred_fallthru
          _
      $region12: #{tpu_custom_call.1} parent=5 // pred_fallthru
        _
      %p117 = scmp.lt.s32.totalorder %s15, 2
      // Predicated region
      $region17: #{tpu_custom_call.1} parent=5 // pred_check
        %p118 = pneg %p117
      $region18: #{tpu_custom_call.1} parent=5 // pred_check_branch
        %120 = sbr.rel (%p118) target = $region20
      $region19: #{tpu_custom_call.1} parent=5 // pred_region
        // Predicated region
        $region21: #{tpu_custom_call.1} parent=19 // pred_check
          %p121 = pneg %p35
        $region22: #{tpu_custom_call.1} parent=19 // pred_check_branch
          %123 = sbr.rel (%p121) target = $region24
        $region23: #{tpu_custom_call.1} parent=19 // pred_region
          %s124 = sand.u32 %s25, 1
          %s125 = scalar_lea.sflag [#allocation3], %s124
          %s126 = sand.u32 %s25, 1
          %s127 = smul.addr %s126, 32
          %s128 = scalar_lea.vmem [#allocation2], %s127
          %s129 = smul.u32 2, %s15
          %131 = vsyncadd %s125, 0
          %s132 = smul.addr %s129, 2
          %s133 = smul.addr %s132, 8
          %s134 = scalar_lea.hbm %s0, %s133
          %s135 = sshll.u32 %s134, 4
          %s136 = int_to_ptr.hbm [resolvable:$true] %s135
          %s137 = sshll.u32 %s128, 4
          %s138 = int_to_ptr.vmem [resolvable:$true] %s137
          %143 = dma.hbm_to_vmem [thread:$0]  %s136, 512, %s138, %s125, 256, 256, 16
        $region24: #{tpu_custom_call.1} parent=19 // pred_fallthru
          _
      $region20: #{tpu_custom_call.1} parent=5 // pred_fallthru
        _
      %p144 = scmp.le.s32.totalorder 1, %s15
      %p145 = scmp.lt.s32.totalorder %s15, 3
      %p146 = pnand %p144, %p145
      %p147 = pneg %p146
      // Predicated region
      $region25: #{tpu_custom_call.1} parent=5 // pred_check
        _
      $region26: #{tpu_custom_call.1} parent=5 // pred_check_branch
        %149 = sbr.rel (%p146) target = $region28
      $region27: #{tpu_custom_call.1} parent=5 // pred_region
        %s150 = ssub.s32 %s15, 1
        %s151 = sand.u32 %s28, 1
        %s152 = scalar_lea.sflag [#allocation3], %s151
        %s153 = sand.u32 %s28, 1
        %s154 = smul.addr %s153, 32
        %s155 = scalar_lea.vmem [#allocation2], %s154
        // Predicated region
        $region29: #{tpu_custom_call.1} parent=27 // pred_check
          %p156 = pneg %p41
        $region30: #{tpu_custom_call.1} parent=27 // pred_check_branch
          %158 = sbr.rel (%p156) target = $region32
        $region31: #{tpu_custom_call.1} parent=27 // pred_region
          %160 = dma.done %s152, 512
        $region32: #{tpu_custom_call.1} parent=27 // pred_fallthru
          _
        // Predicated region
        $region33: #{tpu_custom_call.1} parent=27 // pred_check
          %p161 = pneg %p62
        $region34: #{tpu_custom_call.1} parent=27 // pred_check_branch
          %163 = sbr.rel (%p161) target = $region36
        $region35: #{tpu_custom_call.1} parent=27 // pred_region
          %165 = dma.done [#allocation6], 3456
        $region36: #{tpu_custom_call.1} parent=27 // pred_fallthru
          _
        %s166 = sand.u32 %s28, 1
        %s167 = scalar_lea.sflag [#allocation3], %s166
        %s168 = sand.u32 %s28, 1
        %s169 = smul.addr %s168, 32
        %s170 = scalar_lea.vmem [#allocation2], %s169
        %p171 = pneg %p41
        %p172 = pneg %p38
        %p173 = pneg %p62
        %p174 = pneg %p59
        %p175 = pneg %p88
        %p176 = pneg %p85
        %s177 = sand.u32 %s75, 1
        %s178 = scalar_lea.sflag [#allocation4], %s177
        %s179 = sand.u32 %s75, 1
        %s180 = smul.addr %s179, 48
        %s181 = scalar_lea.vmem [#allocation7], %s180
        %s182 = smul.u32 2, %s20
        %s183 = smul.u32 2, %s20
        %v185 = vld [vmem:[%s155] sm:$0xff]
        %v186 = vld [vmem:[%s155 + $0x8] sm:$0xff]
        %v187 = vld [vmem:[%s155 + $0x10] sm:$0xff]
        %v188 = vld [vmem:[%s155 + $0x18] sm:$0xff]
        %v189 = vpack.c.bf16 %v187, %v185
        %v190 = vpack.c.bf16 %v188, %v186
        %v191 = vld [vmem:[#allocation5] sm:$0xff]
        %v192 = vld [vmem:[#allocation5 + $0x8] sm:$0xf]
        %v193 = vld [vmem:[#allocation5 + $0xc] sm:$0xff]
        %v194 = vld [vmem:[#allocation5 + $0x14] sm:$0xf]
        %v195 = vld [vmem:[#allocation5 + $0x18] sm:$0xff]
        %v196 = vld [vmem:[#allocation5 + $0x20] sm:$0xf]
        %v197 = vld [vmem:[#allocation5 + $0x24] sm:$0xff]
        %v198 = vld [vmem:[#allocation5 + $0x2c] sm:$0xf]
        %v199 = vld [vmem:[#allocation5 + $0x30] sm:$0xff]
        %v200 = vld [vmem:[#allocation5 + $0x38] sm:$0xf]
        %v201 = vld [vmem:[#allocation5 + $0x3c] sm:$0xff]
        %v202 = vld [vmem:[#allocation5 + $0x44] sm:$0xf]
        %v203 = vld [vmem:[#allocation5 + $0x48] sm:$0xff]
        %v204 = vld [vmem:[#allocation5 + $0x50] sm:$0xf]
        %v205 = vld [vmem:[#allocation5 + $0x54] sm:$0xff]
        %v206 = vld [vmem:[#allocation5 + $0x5c] sm:$0xf]
        %v207 = vld [vmem:[#allocation5 + $0x60] sm:$0xff]
        %v208 = vld [vmem:[#allocation5 + $0x68] sm:$0xf]
        %v209 = vld [vmem:[#allocation5 + $0x6c] sm:$0xff]
        %v210 = vld [vmem:[#allocation5 + $0x74] sm:$0xf]
        %v211 = vld [vmem:[#allocation5 + $0x78] sm:$0xff]
        %v212 = vld [vmem:[#allocation5 + $0x80] sm:$0xf]
        %v213 = vld [vmem:[#allocation5 + $0x84] sm:$0xff]
        %v214 = vld [vmem:[#allocation5 + $0x8c] sm:$0xf]
        %v215 = vld [vmem:[#allocation5 + $0x90] sm:$0xff]
        %v216 = vld [vmem:[#allocation5 + $0x98] sm:$0xf]
        %v217 = vld [vmem:[#allocation5 + $0x9c] sm:$0xff]
        %v218 = vld [vmem:[#allocation5 + $0xa4] sm:$0xf]
        %v219 = vld [vmem:[#allocation5 + $0xa8] sm:$0xff]
        %v220 = vld [vmem:[#allocation5 + $0xb0] sm:$0xf]
        %v221 = vld [vmem:[#allocation5 + $0xb4] sm:$0xff]
        %v222 = vld [vmem:[#allocation5 + $0xbc] sm:$0xf]
        %v223 = vld [vmem:[#allocation5 + $0xc0] sm:$0xff]
        %v224 = vld [vmem:[#allocation5 + $0xc8] sm:$0xf]
        %v225 = vld [vmem:[#allocation5 + $0xcc] sm:$0xff]
        %v226 = vld [vmem:[#allocation5 + $0xd4] sm:$0xf]
        %v263 = vunpack.c.l.b16 %v191
        %v264 = vunpack.c.h.b16 %v191
        %v265 = vunpack.c.l.b16 %v192
        %v266 = vunpack.c.l.b16 %v193
        %v267 = vunpack.c.h.b16 %v193
        %v268 = vunpack.c.l.b16 %v194
        %v269 = vunpack.c.l.b16 %v195
        %v270 = vunpack.c.h.b16 %v195
        %v271 = vunpack.c.l.b16 %v196
        %v272 = vunpack.c.l.b16 %v197
        %v273 = vunpack.c.h.b16 %v197
        %v274 = vunpack.c.l.b16 %v198
        %v275 = vunpack.c.l.b16 %v199
        %v276 = vunpack.c.h.b16 %v199
        %v277 = vunpack.c.l.b16 %v200
        %v278 = vunpack.c.l.b16 %v201
        %v279 = vunpack.c.h.b16 %v201
        %v280 = vunpack.c.l.b16 %v202
        %v281 = vunpack.c.l.b16 %v203
        %v282 = vunpack.c.h.b16 %v203
        %v283 = vunpack.c.l.b16 %v204
        %v284 = vunpack.c.l.b16 %v205
        %v285 = vunpack.c.h.b16 %v205
        %v286 = vunpack.c.l.b16 %v206
        %v287 = vunpack.c.l.b16 %v207
        %v288 = vunpack.c.h.b16 %v207
        %v289 = vunpack.c.l.b16 %v208
        %v290 = vunpack.c.l.b16 %v209
        %v291 = vunpack.c.h.b16 %v209
        %v292 = vunpack.c.l.b16 %v210
        %v293 = vunpack.c.l.b16 %v211
        %v294 = vunpack.c.h.b16 %v211
        %v295 = vunpack.c.l.b16 %v212
        %v296 = vunpack.c.l.b16 %v213
        %v297 = vunpack.c.h.b16 %v213
        %v298 = vunpack.c.l.b16 %v214
        %v299 = vunpack.c.l.b16 %v215
        %v300 = vunpack.c.h.b16 %v215
        %v301 = vunpack.c.l.b16 %v216
        %v302 = vunpack.c.l.b16 %v217
        %v303 = vunpack.c.h.b16 %v217
        %v304 = vunpack.c.l.b16 %v218
        %v305 = vunpack.c.l.b16 %v219
        %v306 = vunpack.c.h.b16 %v219
        %v307 = vunpack.c.l.b16 %v220
        %v308 = vunpack.c.l.b16 %v221
        %v309 = vunpack.c.h.b16 %v221
        %v310 = vunpack.c.l.b16 %v222
        %v311 = vunpack.c.l.b16 %v223
        %v312 = vunpack.c.h.b16 %v223
        %v313 = vunpack.c.l.b16 %v224
        %v314 = vunpack.c.l.b16 %v225
        %v315 = vunpack.c.h.b16 %v225
        %v316 = vunpack.c.l.b16 %v226
        %v317 = vpack.c.b16 %v266, %v263
        %v318 = vpack.c.b16 %v267, %v264
        %v319 = vpack.c.b16 %v268, %v265
        %v320 = vpack.c.b16 %v272, %v269
        %v321 = vpack.c.b16 %v273, %v270
        %v322 = vpack.c.b16 %v274, %v271
        %v323 = vpack.c.b16 %v278, %v275
        %v324 = vpack.c.b16 %v279, %v276
        %v325 = vpack.c.b16 %v280, %v277
        %v326 = vpack.c.b16 %v284, %v281
        %v327 = vpack.c.b16 %v285, %v282
        %v328 = vpack.c.b16 %v286, %v283
        %v329 = vpack.c.b16 %v290, %v287
        %v330 = vpack.c.b16 %v291, %v288
        %v331 = vpack.c.b16 %v292, %v289
        %v332 = vpack.c.b16 %v296, %v293
        %v333 = vpack.c.b16 %v297, %v294
        %v334 = vpack.c.b16 %v298, %v295
        %v335 = vpack.c.b16 %v302, %v299
        %v336 = vpack.c.b16 %v303, %v300
        %v337 = vpack.c.b16 %v304, %v301
        %v338 = vpack.c.b16 %v308, %v305
        %v339 = vpack.c.b16 %v309, %v306
        %v340 = vpack.c.b16 %v310, %v307
        %v341 = vpack.c.b16 %v314, %v311
        %v342 = vpack.c.b16 %v315, %v312
        %v343 = vpack.c.b16 %v316, %v313
        %vm371 = vcmask 130048
        %v373 = vsel %vm371, %v190, 0
        %375 = vmatpush.bf16.msra.mxu0 %v338
        %376 = vmatpush.bf16.msra.mxu0 %v335
        %377 = vmatpush.bf16.msra.mxu0 %v332
        %378 = vmatpush.bf16.msra.mxu0 %v329
        %379 = vmatpush.bf16.msra.mxu0 %v326
        %380 = vmatpush.bf16.msra.mxu0 %v323
        %381 = vmatpush.bf16.msra.mxu0 %v320
        %382 = vmatpush.bf16.msra.mxu0 %v317
        %383 = vmatmul.bf16.gmra.mxu0 %v189
        %v384 = vpop.f32.mrf.mxu0
        %v385 = vadd.f32 0.0, %v384
        %v386 = vpop.f32.mrf.mxu0
        %v387 = vadd.f32 0.0, %v386
        %388 = vdwg.mxu0
        %389 = vmatpush.bf16.msra.mxu0 0
        %390 = vmatpush.bf16.msra.mxu0 0
        %391 = vmatpush.bf16.msra.mxu0 0
        %392 = vmatpush.bf16.msra.mxu0 0
        %393 = vmatpush.bf16.msra.mxu0 0
        %394 = vmatpush.bf16.msra.mxu0 0
        %395 = vmatpush.bf16.msra.mxu0 0
        %396 = vmatpush.bf16.msra.mxu0 %v341
        %397 = vmatmul.bf16.gmra.mxu0 %v373
        %v398 = vpop.f32.mrf.mxu0
        %v399 = vadd.f32 %v385, %v398
        %v400 = vpop.f32.mrf.mxu0
        %v401 = vadd.f32 %v387, %v400
        %402 = vdwg.mxu0
        %403 = vmatpush.bf16.msra.mxu0 %v339
        %404 = vmatpush.bf16.msra.mxu0 %v336
        %405 = vmatpush.bf16.msra.mxu0 %v333
        %406 = vmatpush.bf16.msra.mxu0 %v330
        %407 = vmatpush.bf16.msra.mxu0 %v327
        %408 = vmatpush.bf16.msra.mxu0 %v324
        %409 = vmatpush.bf16.msra.mxu0 %v321
        %410 = vmatpush.bf16.msra.mxu0 %v318
        %411 = vmatmul.bf16.gmra.mxu0 %v189
        %v412 = vpop.f32.mrf.mxu0
        %v413 = vadd.f32 0.0, %v412
        %v414 = vpop.f32.mrf.mxu0
        %v415 = vadd.f32 0.0, %v414
        %416 = vdwg.mxu0
        %417 = vmatpush.bf16.msra.mxu0 0
        %418 = vmatpush.bf16.msra.mxu0 0
        %419 = vmatpush.bf16.msra.mxu0 0
        %420 = vmatpush.bf16.msra.mxu0 0
        %421 = vmatpush.bf16.msra.mxu0 0
        %422 = vmatpush.bf16.msra.mxu0 0
        %423 = vmatpush.bf16.msra.mxu0 0
        %424 = vmatpush.bf16.msra.mxu0 %v342
        %425 = vmatmul.bf16.gmra.mxu0 %v373
        %v426 = vpop.f32.mrf.mxu0
        %v427 = vadd.f32 %v413, %v426
        %v428 = vpop.f32.mrf.mxu0
        %v429 = vadd.f32 %v415, %v428
        %430 = vdwg.mxu0
        %431 = vmatpush.bf16.msra.mxu0 %v340
        %432 = vmatpush.bf16.msra.mxu0 %v337
        %433 = vmatpush.bf16.msra.mxu0 %v334
        %434 = vmatpush.bf16.msra.mxu0 %v331
        %435 = vmatpush.bf16.msra.mxu0 %v328
        %436 = vmatpush.bf16.msra.mxu0 %v325
        %437 = vmatpush.bf16.msra.mxu0 %v322
        %438 = vmatpush.bf16.msra.mxu0 %v319
        %439 = vmatmul.bf16.gmra.mxu0 %v189
        %v440 = vpop.f32.mrf.mxu0
        %v441 = vadd.f32 0.0, %v440
        %v442 = vpop.f32.mrf.mxu0
        %v443 = vadd.f32 0.0, %v442
        %444 = vdwg.mxu0
        %445 = vmatpush.bf16.msra.mxu0 0
        %446 = vmatpush.bf16.msra.mxu0 0
        %447 = vmatpush.bf16.msra.mxu0 0
        %448 = vmatpush.bf16.msra.mxu0 0
        %449 = vmatpush.bf16.msra.mxu0 0
        %450 = vmatpush.bf16.msra.mxu0 0
        %451 = vmatpush.bf16.msra.mxu0 0
        %452 = vmatpush.bf16.msra.mxu0 %v343
        %453 = vmatmul.bf16.gmra.mxu0 %v373
        %v454 = vpop.f32.mrf.mxu0
        %v455 = vadd.f32 %v441, %v454
        %v456 = vpop.f32.mrf.mxu0
        %v457 = vadd.f32 %v443, %v456
        %458 = vdwg.mxu0
        %459 = vst [vmem:[%s181] sm:$0xff] %v399
        %460 = vst [vmem:[%s181 + $0x8] sm:$0xff] %v427
        %vm461 = vcmask 261120
        %462 = vst.msk [vmem:[%s181 + $0x10] sm:$0xff] %vm461, %v455
        %463 = vst [vmem:[%s181 + $0x18] sm:$0xff] %v401
        %464 = vst [vmem:[%s181 + $0x20] sm:$0xff] %v429
        %465 = vst.msk [vmem:[%s181 + $0x28] sm:$0xff] %vm461, %v457
        %s466 = sand.u32 %s75, 1
        %s467 = scalar_lea.sflag [#allocation4], %s466
        %s468 = sand.u32 %s75, 1
        %s469 = smul.addr %s468, 48
        %s470 = scalar_lea.vmem [#allocation7], %s469
        // Predicated region
        $region37: #{tpu_custom_call.1} parent=27 // pred_check
          %p471 = pneg %p85
        $region38: #{tpu_custom_call.1} parent=27 // pred_check_branch
          %473 = sbr.rel (%p471) target = $region40
        $region39: #{tpu_custom_call.1} parent=27 // pred_region
          %s474 = smul.u32 2, %s20
          %476 = vsyncadd %s467, 0
          %s477 = smul.addr %s474, 3
          %s478 = smul.addr %s477, 8
          %s479 = scalar_lea.hbm %s2, %s478
          %s480 = sshll.u32 %s470, 4
          %s481 = int_to_ptr.vmem [resolvable:$true] %s480
          %s482 = sshll.u32 %s479, 4
          %s483 = int_to_ptr.hbm [resolvable:$true] %s482
          %488 = dma.vmem_to_hbm [thread:$0]  %s481, 768, %s483, %s467, 384, 384, 24
        $region40: #{tpu_custom_call.1} parent=27 // pred_fallthru
          _
      $region28: #{tpu_custom_call.1} parent=5 // pred_fallthru
        _
      %p489 = scmp.le.s32.totalorder 2, %s15
      // Predicated region
      $region41: #{tpu_custom_call.1} parent=5 // pred_check
        %p490 = pneg %p489
      $region42: #{tpu_custom_call.1} parent=5 // pred_check_branch
        %492 = sbr.rel (%p490) target = $region44
      $region43: #{tpu_custom_call.1} parent=5 // pred_region
        %s493 = ssub.s32 %s15, 2
        // Predicated region
        $region45: #{tpu_custom_call.1} parent=43 // pred_check
          %p494 = pneg %p91
        $region46: #{tpu_custom_call.1} parent=43 // pred_check_branch
          %496 = sbr.rel (%p494) target = $region48
        $region47: #{tpu_custom_call.1} parent=43 // pred_region
          %s497 = sand.u32 %s76, 1
          %s498 = scalar_lea.sflag [#allocation4], %s497
          %s499 = sand.u32 %s76, 1
          %s500 = smul.addr %s499, 48
          %s501 = scalar_lea.vmem [#allocation7], %s500
          %503 = dma.done %s498, 768
        $region48: #{tpu_custom_call.1} parent=43 // pred_fallthru
          _
      $region44: #{tpu_custom_call.1} parent=5 // pred_fallthru
        _
    $region6: #{tpu_custom_call.1} parent=1 // loop_footer
      %s19 = sadd.s32 1, %s15
    $region7: #{tpu_custom_call.1} parent=1 // loop_footer_branch
      %14 = sbr.rel target = $region3
    $region8: #{tpu_custom_call.1} parent=1 // loop_exit
      _
    %504 = vsyncpa [#allocation3], 1
    %s505 = scalar_lea.sflag [#allocation3], 1
    %506 = vsyncpa %s505, 1
    %507 = vsyncpa [#allocation6], 1
    %508 = vsyncpa [#allocation4], 1
    %s509 = scalar_lea.sflag [#allocation4], 1
    %510 = vsyncpa %s509, 1

// kernel: tpu_custom_call.1
$region0: #{tpu_custom_call.1}
  #allocation0 [shape = 'u32[]', space=smem, size = 0x4, offset = 0x4, fixed_abs, tag = 'smem constant byte address 0x4 - core index']
  #allocation1 [shape = 'u32[72,128]{1,0:T(1,128)}', space=vmem, size = 0x9000, scoped, tag = 'internal scratch']
  %s0 = inlined_call_operand.hbm [shape: f32[32,144], index: 0, kind: input, shape index: {}]
  %s1 = inlined_call_operand.hbm [shape: bf16[144,288], index: 1, kind: input, shape index: {}]
  %s2 = inlined_call_operand.hbm [shape: f32[32,288], index: 2, kind: output, shape index: {}]
  %s3 = sld [smem:[#allocation0]]
  $region49: #{tpu_custom_call.1} parent=0
    _
  %s5 = ssub.s32 1, %s3
  %s6 = scalar_select 0, %s5, %s3
  $region1: #{tpu_custom_call.1} parent=0
    #allocation2 [shape = 'u8[32768]{0}', space=vmem, size = 0x8000, scoped, tag = 'input window, operand 0']
    #allocation3 [shape = 's32[2]{0}', space=sflag, size = 0x8, scoped, tag = 'scoped memory for tpu_custom_call.1']
    #allocation4 [shape = 's32[2]{0}', space=sflag, size = 0x8, scoped, tag = 'scoped memory for tpu_custom_call.1']
    #allocation5 [shape = 'u8[110592]{0}', space=vmem, size = 0x1b000, scoped, tag = 'input window, operand 1, single buffered']
    #allocation6 [shape = 's32[1]{0}', space=sflag, size = 0x4, scoped, tag = 'scoped memory for tpu_custom_call.1']
    #allocation7 [shape = 'u8[49152]{0}', space=vmem, size = 0xc000, scoped, tag = 'output window, operand 0']
    %7 = vsyncpa [#allocation3], 0
    %s8 = scalar_lea.sflag [#allocation3], 1
    %9 = vsyncpa %s8, 0
    %10 = vsyncpa [#allocation6], 0
    %11 = vsyncpa [#allocation4], 0
    %s12 = scalar_lea.sflag [#allocation4], 1
    %13 = vsyncpa %s12, 0
    loop: start=0, step=1, limit=4
    $region2: #{tpu_custom_call.1} parent=1 // loop_pre_header
      _
    $region3: #{tpu_custom_call.1} parent=1 // loop_header
      %s15 = sphi 0, %s19
      %p16 = scmp.ge.s32.totalorder %s15, 4
      %s25 = sphi 0, %s27
      %s28 = sphi 0, %s25
      %s29 = sphi 0, %s28
      %s45 = sphi 0, %s29
      %s49 = sphi 0, %s49
      %s51 = sphi 0, %s49
      %s52 = sphi 0, %s51
      %s66 = sphi 0, %s52
      %s72 = sphi 0, %s74
      %s75 = sphi 0, %s72
      %s76 = sphi 0, %s75
      %s92 = sphi 0, %s76
    $region4: #{tpu_custom_call.1} parent=1 // loop_header_branch
      %18 = sbr.rel (%p16) target = $region8
    $region5: #{tpu_custom_call.1} parent=1 // loop_body
      %s20 = ssub.s32 %s15, 1
      %s21 = ssub.s32 %s15, 2
      %s22 = sadd.s32 %s15, 1
      %s23 = ssub.s32 %s15, %s22
      %p24 = scmp.eq.s32.totalorder %s23, 0
      %s26 = sadd.s32 %s25, 1
      %s27 = scalar_select %p24, %s25, %s26
      %p30 = pneg %p24
      %p31 = scmp.eq.s32.totalorder %s15, 1
      %p32 = por %p30, %p31
      %p33 = scmp.ne.s32.totalorder %s25, %s28
      %p34 = scmp.eq.s32.totalorder %s15, 0
      %p35 = por %p33, %p34
      %p36 = scmp.ne.s32.totalorder %s25, %s28
      %p37 = scmp.eq.s32.totalorder %s20, 1
      %p38 = por %p36, %p37
      %p39 = scmp.ne.s32.totalorder %s28, %s29
      %p40 = scmp.eq.s32.totalorder %s20, 0
      %p41 = por %p39, %p40
      %p42 = scmp.ne.s32.totalorder %s28, %s29
      %p43 = scmp.eq.s32.totalorder %s21, 1
      %p44 = por %p42, %p43
      %p46 = scmp.ne.s32.totalorder %s29, %s45
      %p47 = scmp.eq.s32.totalorder %s21, 0
      %p48 = por %p46, %p47
      %s50 = sadd.s32 %s49, 1
      %p53 = scmp.eq.s32.totalorder %s15, 1
      %p54 = scmp.ne.s32.totalorder %s49, %s51
      %p55 = scmp.eq.s32.totalorder %s15, 0
      %p56 = por %p54, %p55
      %p57 = scmp.ne.s32.totalorder %s49, %s51
      %p58 = scmp.eq.s32.totalorder %s20, 1
      %p59 = por %p57, %p58
      %p60 = scmp.ne.s32.totalorder %s51, %s52
      %p61 = scmp.eq.s32.totalorder %s20, 0
      %p62 = por %p60, %p61
      %p63 = scmp.ne.s32.totalorder %s51, %s52
      %p64 = scmp.eq.s32.totalorder %s21, 1
      %p65 = por %p63, %p64
      %p67 = scmp.ne.s32.totalorder %s52, %s66
      %p68 = scmp.eq.s32.totalorder %s21, 0
      %p69 = por %p67, %p68
      %s70 = ssub.s32 %s15, %s22
      %p71 = scmp.eq.s32.totalorder %s70, 0
      %s73 = sadd.s32 %s72, 1
      %s74 = scalar_select %p71, %s72, %s73
      %p77 = pneg %p71
      %p78 = scmp.eq.s32.totalorder %s15, 1
      %p79 = por %p77, %p78
      %p80 = scmp.ne.s32.totalorder %s72, %s75
      %p81 = scmp.eq.s32.totalorder %s15, 0
      %p82 = por %p80, %p81
      %p83 = scmp.ne.s32.totalorder %s72, %s75
      %p84 = scmp.eq.s32.totalorder %s20, 1
      %p85 = por %p83, %p84
      %p86 = scmp.ne.s32.totalorder %s75, %s76
      %p87 = scmp.eq.s32.totalorder %s20, 0
      %p88 = por %p86, %p87
      %p89 = scmp.ne.s32.totalorder %s75, %s76
      %p90 = scmp.eq.s32.totalorder %s21, 1
      %p91 = por %p89, %p90
      %p93 = scmp.ne.s32.totalorder %s76, %s92
      %p94 = scmp.eq.s32.totalorder %s21, 0
      %p95 = por %p93, %p94
      %p96 = scmp.le.s32.totalorder 1, %s15
      %p97 = scmp.lt.s32.totalorder %s15, 3
      %p98 = pnand %p96, %p97
      %p99 = pneg %p98
      // Predicated region
      $region9: #{tpu_custom_call.1} parent=5 // pred_check
        _
      $region10: #{tpu_custom_call.1} parent=5 // pred_check_branch
        %101 = sbr.rel (%p98) target = $region12
      $region11: #{tpu_custom_call.1} parent=5 // pred_region
        %s102 = ssub.s32 %s15, 1
        // Predicated region
        $region13: #{tpu_custom_call.1} parent=11 // pred_check
          %p103 = pneg %p62
        $region14: #{tpu_custom_call.1} parent=11 // pred_check_branch
          %105 = sbr.rel (%p103) target = $region16
        $region15: #{tpu_custom_call.1} parent=11 // pred_region
          %107 = vsyncadd [#allocation6], 0
          %s108 = sshll.u32 %s1, 4
          %s109 = int_to_ptr.hbm [resolvable:$true] %s108
          %s110 = sshll.u32 [#allocation5], 4
          %s111 = int_to_ptr.vmem [resolvable:$true] %s110
          %116 = dma.hbm_to_vmem [thread:$0]  %s109, 3456, %s111, [#allocation6], 192, 192, 12
        $region16: #{tpu_custom_call.1} parent=11 // pred_fallthru
          _
      $region12: #{tpu_custom_call.1} parent=5 // pred_fallthru
        _
      %p117 = scmp.lt.s32.totalorder %s15, 2
      // Predicated region
      $region17: #{tpu_custom_call.1} parent=5 // pred_check
        %p118 = pneg %p117
      $region18: #{tpu_custom_call.1} parent=5 // pred_check_branch
        %120 = sbr.rel (%p118) target = $region20
      $region19: #{tpu_custom_call.1} parent=5 // pred_region
        // Predicated region
        $region21: #{tpu_custom_call.1} parent=19 // pred_check
          %p121 = pneg %p35
        $region22: #{tpu_custom_call.1} parent=19 // pred_check_branch
          %123 = sbr.rel (%p121) target = $region24
        $region23: #{tpu_custom_call.1} parent=19 // pred_region
          %s124 = sand.u32 %s25, 1
          %s125 = scalar_lea.sflag [#allocation3], %s124
          %s126 = sand.u32 %s25, 1
          %s127 = smul.addr %s126, 32
          %s128 = scalar_lea.vmem [#allocation2], %s127
          %s129 = smul.u32 2, %s15
          %131 = vsyncadd %s125, 0
          %s132 = smul.addr %s129, 2
          %s133 = smul.addr %s132, 8
          %s134 = scalar_lea.hbm %s0, %s133
          %s135 = sshll.u32 %s134, 4
          %s136 = int_to_ptr.hbm [resolvable:$true] %s135
          %s137 = sshll.u32 %s128, 4
          %s138 = int_to_ptr.vmem [resolvable:$true] %s137
          %143 = dma.hbm_to_vmem [thread:$0]  %s136, 512, %s138, %s125, 256, 256, 16
        $region24: #{tpu_custom_call.1} parent=19 // pred_fallthru
          _
      $region20: #{tpu_custom_call.1} parent=5 // pred_fallthru
        _
      %p144 = scmp.le.s32.totalorder 1, %s15
      %p145 = scmp.lt.s32.totalorder %s15, 3
      %p146 = pnand %p144, %p145
      %p147 = pneg %p146
      // Predicated region
      $region25: #{tpu_custom_call.1} parent=5 // pred_check
        _
      $region26: #{tpu_custom_call.1} parent=5 // pred_check_branch
        %149 = sbr.rel (%p146) target = $region28
      $region27: #{tpu_custom_call.1} parent=5 // pred_region
        %s150 = ssub.s32 %s15, 1
        %s151 = sand.u32 %s28, 1
        %s152 = scalar_lea.sflag [#allocation3], %s151
        %s153 = sand.u32 %s28, 1
        %s154 = smul.addr %s153, 32
        %s155 = scalar_lea.vmem [#allocation2], %s154
        // Predicated region
        $region29: #{tpu_custom_call.1} parent=27 // pred_check
          %p156 = pneg %p41
        $region30: #{tpu_custom_call.1} parent=27 // pred_check_branch
          %158 = sbr.rel (%p156) target = $region32
        $region31: #{tpu_custom_call.1} parent=27 // pred_region
          %160 = dma.done %s152, 512
        $region32: #{tpu_custom_call.1} parent=27 // pred_fallthru
          _
        // Predicated region
        $region33: #{tpu_custom_call.1} parent=27 // pred_check
          %p161 = pneg %p62
        $region34: #{tpu_custom_call.1} parent=27 // pred_check_branch
          %163 = sbr.rel (%p161) target = $region36
        $region35: #{tpu_custom_call.1} parent=27 // pred_region
          %165 = dma.done [#allocation6], 3456
        $region36: #{tpu_custom_call.1} parent=27 // pred_fallthru
          _
        %s166 = sand.u32 %s28, 1
        %s167 = scalar_lea.sflag [#allocation3], %s166
        %s168 = sand.u32 %s28, 1
        %s169 = smul.addr %s168, 32
        %s170 = scalar_lea.vmem [#allocation2], %s169
        %p171 = pneg %p41
        %p172 = pneg %p38
        %p173 = pneg %p62
        %p174 = pneg %p59
        %p175 = pneg %p88
        %p176 = pneg %p85
        %s177 = sand.u32 %s75, 1
        %s178 = scalar_lea.sflag [#allocation4], %s177
        %s179 = sand.u32 %s75, 1
        %s180 = smul.addr %s179, 48
        %s181 = scalar_lea.vmem [#allocation7], %s180
        %s182 = smul.u32 2, %s20
        %s183 = smul.u32 2, %s20
        %v185 = vld [vmem:[%s155] sm:$0xff]
        %v186 = vld [vmem:[%s155 + $0x8] sm:$0xff]
        %v187 = vld [vmem:[%s155 + $0x10] sm:$0xff]
        %v188 = vld [vmem:[%s155 + $0x18] sm:$0xff]
        %v189 = vpack.c.bf16 %v187, %v185
        %v190 = vpack.c.bf16 %v188, %v186
        %v191 = vld [vmem:[#allocation5] sm:$0xff]
        %v192 = vld [vmem:[#allocation5 + $0x8] sm:$0xf]
        %v193 = vld [vmem:[#allocation5 + $0xc] sm:$0xff]
        %v194 = vld [vmem:[#allocation5 + $0x14] sm:$0xf]
        %v195 = vld [vmem:[#allocation5 + $0x18] sm:$0xff]
        %v196 = vld [vmem:[#allocation5 + $0x20] sm:$0xf]
        %v197 = vld [vmem:[#allocation5 + $0x24] sm:$0xff]
        %v198 = vld [vmem:[#allocation5 + $0x2c] sm:$0xf]
        %v199 = vld [vmem:[#allocation5 + $0x30] sm:$0xff]
        %v200 = vld [vmem:[#allocation5 + $0x38] sm:$0xf]
        %v201 = vld [vmem:[#allocation5 + $0x3c] sm:$0xff]
        %v202 = vld [vmem:[#allocation5 + $0x44] sm:$0xf]
        %v203 = vld [vmem:[#allocation5 + $0x48] sm:$0xff]
        %v204 = vld [vmem:[#allocation5 + $0x50] sm:$0xf]
        %v205 = vld [vmem:[#allocation5 + $0x54] sm:$0xff]
        %v206 = vld [vmem:[#allocation5 + $0x5c] sm:$0xf]
        %v207 = vld [vmem:[#allocation5 + $0x60] sm:$0xff]
        %v208 = vld [vmem:[#allocation5 + $0x68] sm:$0xf]
        %v209 = vld [vmem:[#allocation5 + $0x6c] sm:$0xff]
        %v210 = vld [vmem:[#allocation5 + $0x74] sm:$0xf]
        %v211 = vld [vmem:[#allocation5 + $0x78] sm:$0xff]
        %v212 = vld [vmem:[#allocation5 + $0x80] sm:$0xf]
        %v213 = vld [vmem:[#allocation5 + $0x84] sm:$0xff]
        %v214 = vld [vmem:[#allocation5 + $0x8c] sm:$0xf]
        %v215 = vld [vmem:[#allocation5 + $0x90] sm:$0xff]
        %v216 = vld [vmem:[#allocation5 + $0x98] sm:$0xf]
        %v217 = vld [vmem:[#allocation5 + $0x9c] sm:$0xff]
        %v218 = vld [vmem:[#allocation5 + $0xa4] sm:$0xf]
        %v219 = vld [vmem:[#allocation5 + $0xa8] sm:$0xff]
        %v220 = vld [vmem:[#allocation5 + $0xb0] sm:$0xf]
        %v221 = vld [vmem:[#allocation5 + $0xb4] sm:$0xff]
        %v222 = vld [vmem:[#allocation5 + $0xbc] sm:$0xf]
        %v223 = vld [vmem:[#allocation5 + $0xc0] sm:$0xff]
        %v224 = vld [vmem:[#allocation5 + $0xc8] sm:$0xf]
        %v225 = vld [vmem:[#allocation5 + $0xcc] sm:$0xff]
        %v226 = vld [vmem:[#allocation5 + $0xd4] sm:$0xf]
        %v263 = vunpack.c.l.b16 %v191
        %v264 = vunpack.c.h.b16 %v191
        %v265 = vunpack.c.l.b16 %v192
        %v266 = vunpack.c.l.b16 %v193
        %v267 = vunpack.c.h.b16 %v193
        %v268 = vunpack.c.l.b16 %v194
        %v269 = vunpack.c.l.b16 %v195
        %v270 = vunpack.c.h.b16 %v195
        %v271 = vunpack.c.l.b16 %v196
        %v272 = vunpack.c.l.b16 %v197
        %v273 = vunpack.c.h.b16 %v197
        %v274 = vunpack.c.l.b16 %v198
        %v275 = vunpack.c.l.b16 %v199
        %v276 = vunpack.c.h.b16 %v199
        %v277 = vunpack.c.l.b16 %v200
        %v278 = vunpack.c.l.b16 %v201
        %v279 = vunpack.c.h.b16 %v201
        %v280 = vunpack.c.l.b16 %v202
        %v281 = vunpack.c.l.b16 %v203
        %v282 = vunpack.c.h.b16 %v203
        %v283 = vunpack.c.l.b16 %v204
        %v284 = vunpack.c.l.b16 %v205
        %v285 = vunpack.c.h.b16 %v205
        %v286 = vunpack.c.l.b16 %v206
        %v287 = vunpack.c.l.b16 %v207
        %v288 = vunpack.c.h.b16 %v207
        %v289 = vunpack.c.l.b16 %v208
        %v290 = vunpack.c.l.b16 %v209
        %v291 = vunpack.c.h.b16 %v209
        %v292 = vunpack.c.l.b16 %v210
        %v293 = vunpack.c.l.b16 %v211
        %v294 = vunpack.c.h.b16 %v211
        %v295 = vunpack.c.l.b16 %v212
        %v296 = vunpack.c.l.b16 %v213
        %v297 = vunpack.c.h.b16 %v213
        %v298 = vunpack.c.l.b16 %v214
        %v299 = vunpack.c.l.b16 %v215
        %v300 = vunpack.c.h.b16 %v215
        %v301 = vunpack.c.l.b16 %v216
        %v302 = vunpack.c.l.b16 %v217
        %v303 = vunpack.c.h.b16 %v217
        %v304 = vunpack.c.l.b16 %v218
        %v305 = vunpack.c.l.b16 %v219
        %v306 = vunpack.c.h.b16 %v219
        %v307 = vunpack.c.l.b16 %v220
        %v308 = vunpack.c.l.b16 %v221
        %v309 = vunpack.c.h.b16 %v221
        %v310 = vunpack.c.l.b16 %v222
        %v311 = vunpack.c.l.b16 %v223
        %v312 = vunpack.c.h.b16 %v223
        %v313 = vunpack.c.l.b16 %v224
        %v314 = vunpack.c.l.b16 %v225
        %v315 = vunpack.c.h.b16 %v225
        %v316 = vunpack.c.l.b16 %v226
        %v317 = vpack.c.b16 %v266, %v263
        %v318 = vpack.c.b16 %v267, %v264
        %v319 = vpack.c.b16 %v268, %v265
        %v320 = vpack.c.b16 %v272, %v269
        %v321 = vpack.c.b16 %v273, %v270
        %v322 = vpack.c.b16 %v274, %v271
        %v323 = vpack.c.b16 %v278, %v275
        %v324 = vpack.c.b16 %v279, %v276
        %v325 = vpack.c.b16 %v280, %v277
        %v326 = vpack.c.b16 %v284, %v281
        %v327 = vpack.c.b16 %v285, %v282
        %v328 = vpack.c.b16 %v286, %v283
        %v329 = vpack.c.b16 %v290, %v287
        %v330 = vpack.c.b16 %v291, %v288
        %v331 = vpack.c.b16 %v292, %v289
        %v332 = vpack.c.b16 %v296, %v293
        %v333 = vpack.c.b16 %v297, %v294
        %v334 = vpack.c.b16 %v298, %v295
        %v335 = vpack.c.b16 %v302, %v299
        %v336 = vpack.c.b16 %v303, %v300
        %v337 = vpack.c.b16 %v304, %v301
        %v338 = vpack.c.b16 %v308, %v305
        %v339 = vpack.c.b16 %v309, %v306
        %v340 = vpack.c.b16 %v310, %v307
        %v341 = vpack.c.b16 %v314, %v311
        %v342 = vpack.c.b16 %v315, %v312
        %v343 = vpack.c.b16 %v316, %v313
        %vm371 = vcmask 130048
        %v373 = vsel %vm371, %v190, 0
        %375 = vmatpush.bf16.msra.mxu0 %v338
        %376 = vmatpush.bf16.msra.mxu0 %v335
        %377 = vmatpush.bf16.msra.mxu0 %v332
        %378 = vmatpush.bf16.msra.mxu0 %v329
        %379 = vmatpush.bf16.msra.mxu0 %v326
        %380 = vmatpush.bf16.msra.mxu0 %v323
        %381 = vmatpush.bf16.msra.mxu0 %v320
        %382 = vmatpush.bf16.msra.mxu0 %v317
        %383 = vmatmul.bf16.gmra.mxu0 %v189
        %v384 = vpop.f32.mrf.mxu0
        %v385 = vadd.f32 0.0, %v384
        %v386 = vpop.f32.mrf.mxu0
        %v387 = vadd.f32 0.0, %v386
        %388 = vdwg.mxu0
        %389 = vmatpush.bf16.msra.mxu0 0
        %390 = vmatpush.bf16.msra.mxu0 0
        %391 = vmatpush.bf16.msra.mxu0 0
        %392 = vmatpush.bf16.msra.mxu0 0
        %393 = vmatpush.bf16.msra.mxu0 0
        %394 = vmatpush.bf16.msra.mxu0 0
        %395 = vmatpush.bf16.msra.mxu0 0
        %396 = vmatpush.bf16.msra.mxu0 %v341
        %397 = vmatmul.bf16.gmra.mxu0 %v373
        %v398 = vpop.f32.mrf.mxu0
        %v399 = vadd.f32 %v385, %v398
        %v400 = vpop.f32.mrf.mxu0
        %v401 = vadd.f32 %v387, %v400
        %402 = vdwg.mxu0
        %403 = vmatpush.bf16.msra.mxu0 %v339
        %404 = vmatpush.bf16.msra.mxu0 %v336
        %405 = vmatpush.bf16.msra.mxu0 %v333
        %406 = vmatpush.bf16.msra.mxu0 %v330
        %407 = vmatpush.bf16.msra.mxu0 %v327
        %408 = vmatpush.bf16.msra.mxu0 %v324
        %409 = vmatpush.bf16.msra.mxu0 %v321
        %410 = vmatpush.bf16.msra.mxu0 %v318
        %411 = vmatmul.bf16.gmra.mxu0 %v189
        %v412 = vpop.f32.mrf.mxu0
        %v413 = vadd.f32 0.0, %v412
        %v414 = vpop.f32.mrf.mxu0
        %v415 = vadd.f32 0.0, %v414
        %416 = vdwg.mxu0
        %417 = vmatpush.bf16.msra.mxu0 0
        %418 = vmatpush.bf16.msra.mxu0 0
        %419 = vmatpush.bf16.msra.mxu0 0
        %420 = vmatpush.bf16.msra.mxu0 0
        %421 = vmatpush.bf16.msra.mxu0 0
        %422 = vmatpush.bf16.msra.mxu0 0
        %423 = vmatpush.bf16.msra.mxu0 0
        %424 = vmatpush.bf16.msra.mxu0 %v342
        %425 = vmatmul.bf16.gmra.mxu0 %v373
        %v426 = vpop.f32.mrf.mxu0
        %v427 = vadd.f32 %v413, %v426
        %v428 = vpop.f32.mrf.mxu0
        %v429 = vadd.f32 %v415, %v428
        %430 = vdwg.mxu0
        %431 = vmatpush.bf16.msra.mxu0 %v340
        %432 = vmatpush.bf16.msra.mxu0 %v337
        %433 = vmatpush.bf16.msra.mxu0 %v334
        %434 = vmatpush.bf16.msra.mxu0 %v331
        %435 = vmatpush.bf16.msra.mxu0 %v328
        %436 = vmatpush.bf16.msra.mxu0 %v325
        %437 = vmatpush.bf16.msra.mxu0 %v322
        %438 = vmatpush.bf16.msra.mxu0 %v319
        %439 = vmatmul.bf16.gmra.mxu0 %v189
        %v440 = vpop.f32.mrf.mxu0
        %v441 = vadd.f32 0.0, %v440
        %v442 = vpop.f32.mrf.mxu0
        %v443 = vadd.f32 0.0, %v442
        %444 = vdwg.mxu0
        %445 = vmatpush.bf16.msra.mxu0 0
        %446 = vmatpush.bf16.msra.mxu0 0
        %447 = vmatpush.bf16.msra.mxu0 0
        %448 = vmatpush.bf16.msra.mxu0 0
        %449 = vmatpush.bf16.msra.mxu0 0
        %450 = vmatpush.bf16.msra.mxu0 0
        %451 = vmatpush.bf16.msra.mxu0 0
        %452 = vmatpush.bf16.msra.mxu0 %v343
        %453 = vmatmul.bf16.gmra.mxu0 %v373
        %v454 = vpop.f32.mrf.mxu0
        %v455 = vadd.f32 %v441, %v454
        %v456 = vpop.f32.mrf.mxu0
        %v457 = vadd.f32 %v443, %v456
        %458 = vdwg.mxu0
        %459 = vst [vmem:[%s181] sm:$0xff] %v399
        %460 = vst [vmem:[%s181 + $0x8] sm:$0xff] %v427
        %vm461 = vcmask 261120
        %462 = vst.msk [vmem:[%s181 + $0x10] sm:$0xff] %vm461, %v455
        %463 = vst [vmem:[%s181 + $0x18] sm:$0xff] %v401
        %464 = vst [vmem:[%s181 + $0x20] sm:$0xff] %v429
        %465 = vst.msk [vmem:[%s181 + $0x28] sm:$0xff] %vm461, %v457
        %s466 = sand.u32 %s75, 1
        %s467 = scalar_lea.sflag [#allocation4], %s466
        %s468 = sand.u32 %s75, 1
        %s469 = smul.addr %s468, 48
        %s470 = scalar_lea.vmem [#allocation7], %s469
        // Predicated region
        $region37: #{tpu_custom_call.1} parent=27 // pred_check
          %p471 = pneg %p85
        $region38: #{tpu_custom_call.1} parent=27 // pred_check_branch
          %473 = sbr.rel (%p471) target = $region40
        $region39: #{tpu_custom_call.1} parent=27 // pred_region
          %s474 = smul.u32 2, %s20
          %476 = vsyncadd %s467, 0
          %s477 = smul.addr %s474, 3
          %s478 = smul.addr %s477, 8
          %s479 = scalar_lea.hbm %s2, %s478
          %s480 = sshll.u32 %s470, 4
          %s481 = int_to_ptr.vmem [resolvable:$true] %s480
          %s482 = sshll.u32 %s479, 4
          %s483 = int_to_ptr.hbm [resolvable:$true] %s482
          %488 = dma.vmem_to_hbm [thread:$0]  %s481, 768, %s483, %s467, 384, 384, 24
        $region40: #{tpu_custom_call.1} parent=27 // pred_fallthru
          _
      $region28: #{tpu_custom_call.1} parent=5 // pred_fallthru
        _
      %p489 = scmp.le.s32.totalorder 2, %s15
      // Predicated region
      $region41: #{tpu_custom_call.1} parent=5 // pred_check
        %p490 = pneg %p489
      $region42: #{tpu_custom_call.1} parent=5 // pred_check_branch
        %492 = sbr.rel (%p490) target = $region44
      $region43: #{tpu_custom_call.1} parent=5 // pred_region
        %s493 = ssub.s32 %s15, 2
        // Predicated region
        $region45: #{tpu_custom_call.1} parent=43 // pred_check
          %p494 = pneg %p91
        $region46: #{tpu_custom_call.1} parent=43 // pred_check_branch
          %496 = sbr.rel (%p494) target = $region48
        $region47: #{tpu_custom_call.1} parent=43 // pred_region
          %s497 = sand.u32 %s76, 1
          %s498 = scalar_lea.sflag [#allocation4], %s497
          %s499 = sand.u32 %s76, 1
          %s500 = smul.addr %s499, 48
          %s501 = scalar_lea.vmem [#allocation7], %s500
          %503 = dma.done %s498, 768
        $region48: #{tpu_custom_call.1} parent=43 // pred_fallthru
          _
      $region44: #{tpu_custom_call.1} parent=5 // pred_fallthru
        _
    $region6: #{tpu_custom_call.1} parent=1 // loop_footer
      %s19 = sadd.s32 1, %s15
    $region7: #{tpu_custom_call.1} parent=1 // loop_footer_branch
      %14 = sbr.rel target = $region3
    $region8: #{tpu_custom_call.1} parent=1 // loop_exit
      _
    %504 = vsyncpa [#allocation3], 1
    %s505 = scalar_lea.sflag [#allocation3], 1
    %506 = vsyncpa %s505, 1
    %507 = vsyncpa [#allocation6], 1
    %508 = vsyncpa [#allocation4], 1
    %s509 = scalar_lea.sflag [#allocation4], 1
    %510 = vsyncpa %s509, 1

</llo_original>
